<compile_context>
chip_gen: v7x
topology: tpu7x:2x2x1
jax: 0.10.0
libtpu: 0.0.40
codegen_flags: <defaults>
</compile_context>

<pallas_src>
import numpy as np
import jax
import jax.numpy as jnp
from jax import lax
from jax.experimental import pallas as pl
from jax.experimental.pallas import tpu as pltpu


def _dicke_basis_4q():
    """Dicke basis for 4 qubits (dim=2): 5 states of dimension 16.

    Row k (before reversal) is the normalized symmetric superposition of all
    computational basis states of Hamming weight k.  Reversed with [::-1] to
    mirror `numqi.dicke.get_dicke_basis(4, dim=2)[::-1]` in the reference.
    """
    # TODO(synk): numqi's internal Dicke-state ordering is reproduced here as
    # weight k = 0..4 then reversed; only indices {0, 2, 4} of the reversed
    # basis are used by the model, which are symmetric under this choice.
    basis = np.zeros((5, 16), dtype=np.float64)
    for k in range(5):
        idxs = [i for i in range(16) if bin(i).count("1") == k]
        basis[k, idxs] = 1.0 / np.sqrt(len(idxs))
    return basis[::-1].copy()


def _pack_constants(basis16, prdm, pcoeff):
    """Pack all fixed model data into one (5, 25, 16) float64 array.

    plane 0: CQ[5j+k, :]   = vec(B_j @ B_k^T), B_j = basis[j].reshape(4,4)
    plane 1: A[p, p//5]    = 1  (one-hot masks that build qn[p//5])
    plane 2: B[p, p%5]     = 1  (one-hot masks that build qn[p%5])
    plane 3: row 0         = vec(prdm), rest zero
    plane 4: row 0, 0:5    = pcoeff scattered to indices {0,2,4}, rest zero
    """
    B = basis16.reshape(5, 4, 4)
    cq = np.zeros((25, 16), np.float64)
    a_mask = np.zeros((25, 16), np.float64)
    b_mask = np.zeros((25, 16), np.float64)
    for j in range(5):
        for k in range(5):
            cq[5 * j + k] = (B[j] @ B[k].T).reshape(-1)
    for p in range(25):
        a_mask[p, p // 5] = 1.0
        b_mask[p, p % 5] = 1.0
    prdm_row = np.zeros((25, 16), np.float64)
    prdm_row[0] = prdm.reshape(-1)
    sel_row = np.zeros((25, 16), np.float64)
    sel_row[0, 0] = pcoeff[0]
    sel_row[0, 2] = pcoeff[1]
    sel_row[0, 4] = pcoeff[2]
    return np.stack([cq, a_mask, b_mask, prdm_row, sel_row])   # (5, 25, 16)


def _loss_kernel(qc_ref, const_ref, out_ref):
    # qc_ref:    (1, 5)      trainable qcoeff
    # const_ref: (5, 25, 16) packed constants (see _pack_constants)
    # out_ref:   (1, 1)      scalar loss
    q = qc_ref[...]                                        # (1, 5)
    qn = q * lax.rsqrt(jnp.sum(q * q))                     # normalized qcoeff

    # fidelity = (pcoeff[0]*qn[0] + pcoeff[1]*qn[2] + pcoeff[2]*qn[4])^2
    # as a masked dot: sel holds pcoeff at lanes {0,2,4}, zeros elsewhere.
    sel = const_ref[4][0:1, 0:5]                           # (1, 5)
    fid = jnp.sum(sel * qn) ** 2

    # w[5j+k] = qn[j]*qn[k]  (outer(qn, qn) laid out along sublanes), built
    # with mask-multiply-reduce: no cross-lane extracts, no transpose, no MXU.
    a_mask = const_ref[1][:, 0:5]                          # (25, 5) one-hot p//5
    b_mask = const_ref[2][:, 0:5]                          # (25, 5) one-hot p%5
    qa = jnp.sum(a_mask * qn, axis=1, keepdims=True)       # (25, 1) = qn[p//5]
    qb = jnp.sum(b_mask * qn, axis=1, keepdims=True)       # (25, 1) = qn[p%5]
    w = qa * qb                                            # (25, 1)

    # vec(qrdm) = vec(qstate @ qstate.T) = sum_{jk} qn_j qn_k vec(B_j B_k^T)
    q16 = jnp.sum(w * const_ref[0], axis=0, keepdims=True)  # (1, 16)
    diff = const_ref[3][0:1, :] - q16                        # tmp1, lane-dense
    loss = jnp.sum(diff * diff) + fid                        # dot(tmp1,tmp1)+fid
    out_ref[...] = jnp.broadcast_to(loss, (1, 1))


def dummy_model_loss(qcoeff, const_pack):
    """Wrapper: casts / reshapes (glue only) and invokes the Pallas kernel."""
    qcoeff2 = jnp.asarray(qcoeff, jnp.float32).reshape(1, 5)
    const2 = jnp.asarray(const_pack, jnp.float32)          # (5, 25, 16)

    vmem_spec = pl.BlockSpec(memory_space=pltpu.MemorySpace.VMEM)
    out = pl.pallas_call(
        _loss_kernel,
        out_shape=jax.ShapeDtypeStruct((1, 1), jnp.float32),
        in_specs=[vmem_spec, vmem_spec],
        out_specs=vmem_spec,
    )(qcoeff2, const2)
    return out[0, 0]


def reference_loss(qcoeff_np, basis_np, prdm_np, pcoeff_np):
    """Pure-numpy (float64) reference mirroring the PyTorch forward."""
    q = qcoeff_np / np.linalg.norm(qcoeff_np)
    qstate = (q @ basis_np).reshape(4, 4)
    tmp1 = (prdm_np - qstate @ qstate.T).reshape(-1)
    fidelity = (pcoeff_np[0] * q[0] + pcoeff_np[1] * q[2]
                + pcoeff_np[2] * q[4]) ** 2
    return float(tmp1 @ tmp1 + fidelity)


if __name__ == "__main__":
    # ---- deterministic "module __init__" setup (host-side, float64) ----
    basis_np = _dicke_basis_4q()                           # (5, 16)
    pcoeff_raw = np.array([-0.91255, 0.32392, 0.24965])
    pcoeff_np = pcoeff_raw / np.linalg.norm(pcoeff_raw)
    pstate = (pcoeff_np[0] * basis_np[0]
              + pcoeff_np[1] * basis_np[2]
              + pcoeff_np[2] * basis_np[4]).reshape(4, 4)
    prdm_np = pstate @ pstate.T                            # (4, 4)
    const_pack = _pack_constants(basis_np, prdm_np, pcoeff_np)   # (5, 25, 16)

    # The torch Parameter init is ones(5); draw a deterministic nontrivial
    # value from PRNGKey(0) instead so the normalization path is exercised.
    key = jax.random.PRNGKey(0)
    qcoeff = jax.random.normal(key, (5,), dtype=jnp.float32)

    loss = dummy_model_loss(qcoeff, const_pack)
    loss = jax.block_until_ready(loss)

    ref = reference_loss(np.asarray(qcoeff, dtype=np.float64),
                         basis_np, prdm_np, pcoeff_np)
    assert abs(float(loss) - ref) <= 1e-4 * max(1.0, abs(ref)), (float(loss), ref)
    print("KERNEL_OK")
</pallas_src>

<mosaic_0001>
module attributes {stable_mosaic.version = 11 : i64} {
  func.func @_loss_kernel(%arg0: memref<1x5xf32, #tpu.memory_space<vmem>>, %arg1: memref<5x25x16xf32, #tpu.memory_space<vmem>>, %arg2: memref<1x1xf32, #tpu.memory_space<vmem>>) attributes {dimension_semantics = [], scalar_prefetch = 0 : i64, scratch_operands = 0 : i64, tpu.core_type = #tpu.core_type<tc>} {
    %c0 = arith.constant 0 : index
    %c0_0 = arith.constant 0 : index
    %0 = vector.load %arg0[%c0, %c0_0] : memref<1x5xf32, #tpu.memory_space<vmem>>, vector<1x5xf32>
    %1 = arith.mulf %0, %0 : vector<1x5xf32>
    %2 = vector.shape_cast %1 : vector<1x5xf32> to vector<1x1x5xf32>
    %cst = arith.constant dense<0.000000e+00> : vector<1xf32>
    %3 = vector.multi_reduction <add>, %2, %cst [1, 2] : vector<1x1x5xf32> to vector<1xf32>
    %4 = vector.shape_cast %3 : vector<1xf32> to vector<1x1x1xf32>
    %5 = vector.extract %4[0, 0, 0] : f32 from vector<1x1x1xf32>
    %6 = math.rsqrt %5 : f32
    %7 = vector.broadcast %6 : f32 to vector<1x5xf32>
    %8 = arith.mulf %0, %7 : vector<1x5xf32>
    %c4 = arith.constant 4 : index
    %c0_1 = arith.constant 0 : index
    %c0_2 = arith.constant 0 : index
    %9 = vector.load %arg1[%c4, %c0_1, %c0_2] : memref<5x25x16xf32, #tpu.memory_space<vmem>>, vector<1x25x16xf32>
    %10 = vector.shape_cast %9 : vector<1x25x16xf32> to vector<25x16xf32>
    %11 = vector.extract_strided_slice %10 {offsets = [0, 0], sizes = [1, 5], strides = [1, 1]} : vector<25x16xf32> to vector<1x5xf32>
    %12 = arith.mulf %11, %8 : vector<1x5xf32>
    %13 = vector.shape_cast %12 : vector<1x5xf32> to vector<1x1x5xf32>
    %cst_3 = arith.constant dense<0.000000e+00> : vector<1xf32>
    %14 = vector.multi_reduction <add>, %13, %cst_3 [1, 2] : vector<1x1x5xf32> to vector<1xf32>
    %15 = vector.shape_cast %14 : vector<1xf32> to vector<1x1x1xf32>
    %16 = vector.extract %15[0, 0, 0] : f32 from vector<1x1x1xf32>
    %17 = arith.mulf %16, %16 : f32
    %c1 = arith.constant 1 : index
    %c0_4 = arith.constant 0 : index
    %c0_5 = arith.constant 0 : index
    %18 = vector.load %arg1[%c1, %c0_4, %c0_5] : memref<5x25x16xf32, #tpu.memory_space<vmem>>, vector<1x25x16xf32>
    %19 = vector.shape_cast %18 : vector<1x25x16xf32> to vector<25x16xf32>
    %20 = vector.extract_strided_slice %19 {offsets = [0, 0], sizes = [25, 5], strides = [1, 1]} : vector<25x16xf32> to vector<25x5xf32>
    %c2 = arith.constant 2 : index
    %c0_6 = arith.constant 0 : index
    %c0_7 = arith.constant 0 : index
    %21 = vector.load %arg1[%c2, %c0_6, %c0_7] : memref<5x25x16xf32, #tpu.memory_space<vmem>>, vector<1x25x16xf32>
    %22 = vector.shape_cast %21 : vector<1x25x16xf32> to vector<25x16xf32>
    %23 = vector.extract_strided_slice %22 {offsets = [0, 0], sizes = [25, 5], strides = [1, 1]} : vector<25x16xf32> to vector<25x5xf32>
    %24 = vector.broadcast %8 : vector<1x5xf32> to vector<25x5xf32>
    %25 = arith.mulf %20, %24 : vector<25x5xf32>
    %cst_8 = arith.constant dense<0.000000e+00> : vector<25xf32>
    %26 = vector.multi_reduction <add>, %25, %cst_8 [1] : vector<25x5xf32> to vector<25xf32>
    %27 = vector.shape_cast %26 : vector<25xf32> to vector<25x1xf32>
    %28 = vector.broadcast %8 : vector<1x5xf32> to vector<25x5xf32>
    %29 = arith.mulf %23, %28 : vector<25x5xf32>
    %cst_9 = arith.constant dense<0.000000e+00> : vector<25xf32>
    %30 = vector.multi_reduction <add>, %29, %cst_9 [1] : vector<25x5xf32> to vector<25xf32>
    %31 = vector.shape_cast %30 : vector<25xf32> to vector<25x1xf32>
    %32 = arith.mulf %27, %31 : vector<25x1xf32>
    %c0_10 = arith.constant 0 : index
    %c0_11 = arith.constant 0 : index
    %c0_12 = arith.constant 0 : index
    %33 = vector.load %arg1[%c0_10, %c0_11, %c0_12] : memref<5x25x16xf32, #tpu.memory_space<vmem>>, vector<1x25x16xf32>
    %34 = vector.shape_cast %33 : vector<1x25x16xf32> to vector<25x16xf32>
    %35 = vector.broadcast %32 : vector<25x1xf32> to vector<25x16xf32>
    %36 = arith.mulf %35, %34 : vector<25x16xf32>
    %cst_13 = arith.constant dense<0.000000e+00> : vector<16xf32>
    %37 = vector.multi_reduction <add>, %36, %cst_13 [0] : vector<25x16xf32> to vector<16xf32>
    %38 = vector.shape_cast %37 : vector<16xf32> to vector<1x16xf32>
    %c3 = arith.constant 3 : index
    %c0_14 = arith.constant 0 : index
    %c0_15 = arith.constant 0 : index
    %39 = vector.load %arg1[%c3, %c0_14, %c0_15] : memref<5x25x16xf32, #tpu.memory_space<vmem>>, vector<1x25x16xf32>
    %40 = vector.shape_cast %39 : vector<1x25x16xf32> to vector<25x16xf32>
    %41 = vector.extract_strided_slice %40 {offsets = [0, 0], sizes = [1, 16], strides = [1, 1]} : vector<25x16xf32> to vector<1x16xf32>
    %42 = arith.subf %41, %38 : vector<1x16xf32>
    %43 = arith.mulf %42, %42 : vector<1x16xf32>
    %44 = vector.shape_cast %43 : vector<1x16xf32> to vector<1x1x16xf32>
    %cst_16 = arith.constant dense<0.000000e+00> : vector<1xf32>
    %45 = vector.multi_reduction <add>, %44, %cst_16 [1, 2] : vector<1x1x16xf32> to vector<1xf32>
    %46 = vector.shape_cast %45 : vector<1xf32> to vector<1x1x1xf32>
    %47 = vector.extract %46[0, 0, 0] : f32 from vector<1x1x1xf32>
    %48 = arith.addf %47, %17 : f32
    %49 = vector.broadcast %48 : f32 to vector<1x1xf32>
    %c0_17 = arith.constant 0 : index
    %c0_18 = arith.constant 0 : index
    %50 = vector.load %arg2[%c0_17, %c0_18] : memref<1x1xf32, #tpu.memory_space<vmem>>, vector<1x1xf32>
    tpu.vector_store %arg2[%c0_17, %c0_18], %49 {strides = array<i32>} : memref<1x1xf32, #tpu.memory_space<vmem>>, vector<1x1xf32>,
    return
  }
}

</mosaic_0001>

<llo_original>
// kernel: tpu_custom_call.1
$region0: #{tpu_custom_call.1}
  #allocation0 [shape = 'u32[]', space=smem, size = 0x4, offset = 0x4, fixed_abs, tag = 'smem constant byte address 0x4 - core index']
  #allocation1 [shape = 'u32[144,128]{1,0:T(1,128)}', space=vmem, size = 0x12000, scoped, tag = 'internal scratch']
  %s0 = inlined_call_operand.vmem [shape: f32[1,5], index: 0, kind: input, shape index: {}]
  %s1 = inlined_call_operand.vmem [shape: f32[5,25,16], index: 1, kind: input, shape index: {}]
  %s2 = inlined_call_operand.hbm [shape: f32[1,1], index: 2, kind: output, shape index: {}]
  %s3 = sld [smem:[#allocation0]]
  $region18: #{tpu_custom_call.1} parent=0
    _
  %s5 = ssub.s32 1, %s3
  %s6 = scalar_select 0, %s5, %s3
  $region1: #{tpu_custom_call.1} parent=0
    #allocation2 [shape = 'u8[512]{0}', space=vmem, size = 0x400, scoped, tag = 'output window, operand 0, single buffered']
    #allocation3 [shape = 's32[1]{0}', space=sflag, size = 0x4, scoped, tag = 'scoped memory for tpu_custom_call.1']
    %7 = vsyncpa [#allocation3], 0
    // Predicated region
    $region2: #{tpu_custom_call.1} parent=1 // pred_check
      _
    $region3: #{tpu_custom_call.1} parent=1 // pred_check_branch
      %9 = sbr.rel (0) target = $region5
    $region4: #{tpu_custom_call.1} parent=1 // pred_region
      _
    $region5: #{tpu_custom_call.1} parent=1 // pred_fallthru
      _
    // Predicated region
    $region6: #{tpu_custom_call.1} parent=1 // pred_check
      _
    $region7: #{tpu_custom_call.1} parent=1 // pred_check_branch
      %11 = sbr.rel (0) target = $region9
    $region8: #{tpu_custom_call.1} parent=1 // pred_region
      _
    $region9: #{tpu_custom_call.1} parent=1 // pred_fallthru
      _
    %v12 = vld [vmem:[%s0] sm:$0x1]
    %v13 = vmul.f32 %v12, %v12
    %vm14 = vcmask 32768
    %v15 = vsel %vm14, %v13, 0.0
    %16 = vadd.xlane.f32.xlu0 %v15
    %v17 = vpop.xlane.xlu0 %16
    %v18 = vrot.slane %v17, 4
    %v19 = vadd.f32 %v17, %v18
    %v20 = vrot.slane %v19, 2
    %v21 = vadd.f32 %v19, %v20
    %v22 = vrot.slane %v21, 1
    %v23 = vadd.f32 %v21, %v22
    %s24 = vtos %v23
    %v25 = vstv %s24
    %v26 = vrsqrt.pop %v25
    %s27 = vtos %v26
    %v28 = vstv %s27
    %v29 = vmul.f32 %v12, %v28
    %s30 = scalar_lea.vmem %s1, 128
    %v31 = vld [vmem:[%s30] sm:$0xff]
    %v32 = vmul.f32 %v31, %v29
    %v33 = vsel %vm14, %v32, 0.0
    %34 = vadd.xlane.f32.xlu0 %v33
    %v35 = vpop.xlane.xlu0 %34
    %v36 = vrot.slane %v35, 4
    %v37 = vadd.f32 %v35, %v36
    %v38 = vrot.slane %v37, 2
    %v39 = vadd.f32 %v37, %v38
    %v40 = vrot.slane %v39, 1
    %v41 = vadd.f32 %v39, %v40
    %s42 = vtos %v41
    %s43 = smul.f32 %s42, %s42
    %s44 = scalar_lea.vmem %s1, 32
    %v45 = vld [vmem:[%s44] sm:$0xff]
    %v46 = vld [vmem:[%s44 + $0x8] sm:$0xff]
    %v47 = vld [vmem:[%s44 + $0x10] sm:$0xff]
    %v48 = vld [vmem:[%s44 + $0x18] sm:$0x1]
    %s49 = scalar_lea.vmem %s1, 64
    %v50 = vld [vmem:[%s49] sm:$0xff]
    %v51 = vld [vmem:[%s49 + $0x8] sm:$0xff]
    %v52 = vld [vmem:[%s49 + $0x10] sm:$0xff]
    %v53 = vld [vmem:[%s49 + $0x18] sm:$0x1]
    %v55 = vlaneseq
    %v56 = vshrl.u32 %v55, 7
    %v57 = vsub.s32 0, %v56
    %v58 = vrot.slane %v29, %v57
    %v60 = vmul.f32 %v45, %v58
    %v61 = vmul.f32 %v46, %v58
    %v62 = vmul.f32 %v47, %v58
    %v63 = vmul.f32 %v48, %v58
    %vm64 = vcmask 39936
    %v65 = vsel %vm64, %v60, 0.0
    %66 = vadd.xlane.f32.xlu0 %v65
    %v67 = vpop.xlane.xlu0 %66
    %v68 = vsel %vm64, %v61, 0.0
    %69 = vadd.xlane.f32.xlu0 %v68
    %v70 = vpop.xlane.xlu0 %69
    %v71 = vsel %vm64, %v62, 0.0
    %72 = vadd.xlane.f32.xlu0 %v71
    %v73 = vpop.xlane.xlu0 %72
    %v74 = vsel %vm14, %v63, 0.0
    %75 = vadd.xlane.f32.xlu0 %v74
    %v76 = vpop.xlane.xlu0 %75
    %v77 = vmul.f32 %v50, %v58
    %v78 = vmul.f32 %v51, %v58
    %v79 = vmul.f32 %v52, %v58
    %v80 = vmul.f32 %v53, %v58
    %v81 = vsel %vm64, %v77, 0.0
    %82 = vadd.xlane.f32.xlu0 %v81
    %v83 = vpop.xlane.xlu0 %82
    %v84 = vsel %vm64, %v78, 0.0
    %85 = vadd.xlane.f32.xlu0 %v84
    %v86 = vpop.xlane.xlu0 %85
    %v87 = vsel %vm64, %v79, 0.0
    %88 = vadd.xlane.f32.xlu0 %v87
    %v89 = vpop.xlane.xlu0 %88
    %v90 = vsel %vm14, %v80, 0.0
    %91 = vadd.xlane.f32.xlu0 %v90
    %v92 = vpop.xlane.xlu0 %91
    %v93 = vmul.f32 %v67, %v83
    %v94 = vmul.f32 %v70, %v86
    %v95 = vmul.f32 %v73, %v89
    %v96 = vmul.f32 %v76, %v92
    %v97 = vld [vmem:[%s1] sm:$0xff]
    %v98 = vld [vmem:[%s1 + $0x8] sm:$0xff]
    %v99 = vld [vmem:[%s1 + $0x10] sm:$0xff]
    %v100 = vld [vmem:[%s1 + $0x18] sm:$0x1]
    %v101 = vmul.f32 %v93, %v97
    %v102 = vmul.f32 %v94, %v98
    %v103 = vmul.f32 %v95, %v99
    %v104 = vmul.f32 %v96, %v100
    %vm105 = vcmask 130048
    %v106 = vsel %vm105, %v101, 0.0
    %v107 = vsel %vm105, %v102, 0.0
    %v108 = vadd.f32 %v106, %v107
    %v109 = vsel %vm105, %v103, 0.0
    %v110 = vadd.f32 %v108, %v109
    %vm111 = vcmask 122880
    %v112 = vsel %vm111, %v104, 0.0
    %v113 = vadd.f32 %v110, %v112
    %v114 = vrot.slane %v113, 4
    %v115 = vadd.f32 %v113, %v114
    %v116 = vrot.slane %v115, 2
    %v117 = vadd.f32 %v115, %v116
    %v118 = vrot.slane %v117, 1
    %v119 = vadd.f32 %v117, %v118
    %s120 = scalar_lea.vmem %s1, 96
    %v121 = vld [vmem:[%s120] sm:$0xff]
    %v122 = vsub.f32 %v121, %v119
    %v123 = vmul.f32 %v122, %v122
    %v124 = vsel %vm111, %v123, 0.0
    %125 = vadd.xlane.f32.xlu0 %v124
    %v126 = vpop.xlane.xlu0 %125
    %v127 = vrot.slane %v126, 4
    %v128 = vadd.f32 %v126, %v127
    %v129 = vrot.slane %v128, 2
    %v130 = vadd.f32 %v128, %v129
    %v131 = vrot.slane %v130, 1
    %v132 = vadd.f32 %v130, %v131
    %s133 = vtos %v132
    %s134 = sadd.f32 %s133, %s43
    %v135 = vstv %s134
    %vm136 = vcmask 0
    %137 = vst.msk [vmem:[#allocation2] sm:$0x1] %vm136, %v135
    // Predicated region
    $region10: #{tpu_custom_call.1} parent=1 // pred_check
      _
    $region11: #{tpu_custom_call.1} parent=1 // pred_check_branch
      %139 = sbr.rel (0) target = $region13
    $region12: #{tpu_custom_call.1} parent=1 // pred_region
      %s141 = ssub.s32 16, 16
      %142 = vsyncadd [#allocation3], %s141
      %s144 = sshll.u32 [#allocation2], 4
      %s145 = int_to_ptr.vmem [resolvable:$true] %s144
      %147 = dma.vmem_to_hbm [thread:$0]  %s145, 16, %s2, [#allocation3]
    $region13: #{tpu_custom_call.1} parent=1 // pred_fallthru
      _
    // Predicated region
    $region14: #{tpu_custom_call.1} parent=1 // pred_check
      _
    $region15: #{tpu_custom_call.1} parent=1 // pred_check_branch
      %149 = sbr.rel (0) target = $region17
    $region16: #{tpu_custom_call.1} parent=1 // pred_region
      %150 = dma.done [#allocation3], 16
    $region17: #{tpu_custom_call.1} parent=1 // pred_fallthru
      _
    %151 = vsyncpa [#allocation3], 1

</llo_original>
